<compile_context>
chip_gen: v7x
topology: tpu7x:2x2x1
jax: 0.10.0
libtpu: 0.0.40
codegen_flags: <defaults>
</compile_context>

<pallas_src>
import math

import jax
import jax.numpy as jnp
from jax.experimental import pallas as pl
from jax.experimental.pallas import tpu as pltpu


def _sinusoidal_kernel(fp_ref, x_ref, out_ref):
    # fp_ref : (2, emb_dim) f32 -- row 0: freqs tiled to full width,
    #                              row 1: phase (0 for sin lanes, pi/2 for cos lanes)
    # x_ref  : (TB, 1) f32 positions
    # out_ref: (TB, emb_dim)
    freqs = fp_ref[0:1, :]                       # (1, emb_dim)
    phase = fp_ref[1:2, :]                       # (1, emb_dim)
    # cos(t) == sin(t + pi/2): one mul + one add + one sin, then a single
    # lane-dense unmasked full-width store (no half-width masked stores).
    emb = x_ref[...] * freqs + phase             # (TB, emb_dim) f32
    out_ref[...] = jnp.sin(emb).astype(out_ref.dtype)


def _reference(x: jax.Array, dim: int) -> jax.Array:
    """Pure-JAX reference (also the tiny-problem fast path)."""
    half_dim = dim // 2
    scale = math.log(10000.0) / (half_dim - 1)
    freqs = jnp.exp(jnp.arange(half_dim, dtype=jnp.float32) * -scale)
    emb = x.astype(jnp.float32)[:, None] * freqs[None, :]
    return jnp.concatenate([jnp.sin(emb), jnp.cos(emb)], axis=-1)


def sinusoidal_pos_emb(
    x: jax.Array,
    dim: int,
    *,
    out_dtype=jnp.float32,
    block_rows: int | None = None,
    force_pallas: bool = False,
) -> jax.Array:
    """JAX/Pallas equivalent of SinusoidalPosEmb(dim)(x) for 1-D x."""
    assert x.ndim == 1, "expects a 1-D tensor of positions/timesteps"
    half_dim = dim // 2
    assert half_dim >= 2, "dim must be >= 4 (PyTorch module divides by half_dim - 1)"
    emb_dim = 2 * half_dim                       # == dim for even dim (matches torch.cat)
    B = x.shape[0]

    # Tiny-problem fast path: pallas_call launch overhead dominates and blocks
    # fusion with the consumer MLP. Keep it in plain JAX.
    if not force_pallas and B * emb_dim <= 8 * 1024:
        return _reference(x, dim).astype(out_dtype)

    out_itemsize = jnp.dtype(out_dtype).itemsize
    granule = 8 if out_itemsize >= 4 else 16     # bf16 min tile is (16, 128)

    # ---- Block-size selection --------------------------------------------
    if block_rows is None:
        # Per-row VMEM cost: lane-padded output row + lane-padded (tb,1) input row
        # (a (tb,1) f32 block is stored across a full 128-lane vreg row: 512 B/row).
        out_row_bytes = max(emb_dim, 128) * out_itemsize
        in_row_bytes = 128 * 4
        budget = 2 * 1024 * 1024                 # per buffer; double-buffered in+out
        tb = budget // (out_row_bytes + in_row_bytes)  # stays << v5e's 16 MiB scoped VMEM
        tb = min(tb, 1024)                       # 512-1024-row tiles already ~HBM roofline
        tb = min(tb, pl.cdiv(B, 4))              # keep >=4 grid steps (megacore + overlap)
    else:
        tb = block_rows
    tb = max(granule, (tb // granule) * granule)

    grid_b = pl.cdiv(B, tb)                      # ragged last block handled by Pallas:
                                                 # no pad-to-full-tile, no out[:B] copy.

    # ---- Constant freq/phase row (computed once, resident across the grid) --
    scale = math.log(10000.0) / (half_dim - 1)
    freqs = jnp.exp(jnp.arange(half_dim, dtype=jnp.float32) * -scale)
    freq_phase = jnp.stack(
        [
            jnp.concatenate([freqs, freqs]),                                   # freq row
            jnp.concatenate(
                [jnp.zeros((half_dim,), jnp.float32),
                 jnp.full((half_dim,), math.pi / 2, jnp.float32)]
            ),                                                                 # phase row
        ]
    )                                            # (2, emb_dim) f32

    x2d = x.astype(jnp.float32).reshape(B, 1)

    cost = pl.CostEstimate(
        flops=2 * B * emb_dim,                   # mul + add
        transcendentals=B * emb_dim,             # one sin per output element
        bytes_accessed=4 * B + 4 * 2 * emb_dim + out_itemsize * B * emb_dim,
    )

    return pl.pallas_call(
        _sinusoidal_kernel,
        out_shape=jax.ShapeDtypeStruct((B, emb_dim), out_dtype),
        grid=(grid_b,),
        in_specs=[
            pl.BlockSpec((2, emb_dim), lambda i: (0, 0)),   # freq/phase, stays resident
            pl.BlockSpec((tb, 1), lambda i: (i, 0)),        # positions
        ],
        out_specs=pl.BlockSpec((tb, emb_dim), lambda i: (i, 0)),
        compiler_params=pltpu.CompilerParams(
            dimension_semantics=("parallel",),
        ),
        cost_estimate=cost,
    )(freq_phase, x2d)


if __name__ == "__main__":
    key = jax.random.PRNGKey(0)

    # Main test: lane-dense output (emb_dim = 128), forced through the Pallas path.
    B, dim = 64, 128
    x = jax.random.uniform(key, (B,), jnp.float32, minval=0.0, maxval=1000.0)
    out = jax.block_until_ready(sinusoidal_pos_emb(x, dim, force_pallas=True))
    ref = _reference(x, dim)
    assert out.shape == (B, dim)
    # cos(t) is computed as sin(t + pi/2); for t up to ~1e3 the f32 add costs a
    # few e-5 of argument rounding, so compare with a trig-appropriate tolerance.
    assert jnp.allclose(out, ref, atol=1e-3, rtol=1e-4), float(jnp.max(jnp.abs(out - ref)))

    # Ragged batch (B not a multiple of the block rows): exercises the
    # partial-last-block path (no padding, no out[:B] slice).
    B_r = 60
    x_r = jax.random.uniform(jax.random.PRNGKey(2), (B_r,), jnp.float32, 0.0, 1000.0)
    out_r = jax.block_until_ready(sinusoidal_pos_emb(x_r, dim, force_pallas=True))
    ref_r = _reference(x_r, dim)
    assert out_r.shape == (B_r, dim)
    assert jnp.allclose(out_r, ref_r, atol=1e-3, rtol=1e-4)

    # Tiny / lane-sparse case, still forced through the Pallas kernel.
    B2, dim2 = 8, 32
    x2 = jax.random.uniform(jax.random.PRNGKey(1), (B2,), jnp.float32, 0.0, 1000.0)
    out2 = jax.block_until_ready(sinusoidal_pos_emb(x2, dim2, force_pallas=True))
    assert out2.shape == (B2, dim2)
    assert jnp.allclose(out2, _reference(x2, dim2), atol=1e-3, rtol=1e-4)

    # Auto-dispatch (tiny -> pure-JAX fallback) also matches exactly.
    out3 = jax.block_until_ready(sinusoidal_pos_emb(x2, dim2))
    assert jnp.allclose(out3, _reference(x2, dim2), atol=1e-5, rtol=1e-5)

    # bf16 output path (tb rounded to 16): halves HBM writeback for bf16 consumers.
    out4 = jax.block_until_ready(
        sinusoidal_pos_emb(x, dim, out_dtype=jnp.bfloat16, force_pallas=True)
    )
    assert out4.dtype == jnp.bfloat16
    assert jnp.allclose(out4.astype(jnp.float32), ref, atol=1e-2, rtol=1e-2)

    print("KERNEL_OK")
</pallas_src>

<mosaic_0001>
module attributes {stable_mosaic.version = 11 : i64} {
  func.func @_sinusoidal_kernel(%arg0: i32, %arg1: memref<2x128xf32, #tpu.memory_space<vmem>>, %arg2: memref<16x1xf32, #tpu.memory_space<vmem>>, %arg3: memref<16x128xf32, #tpu.memory_space<vmem>>) attributes {dimension_semantics = [#tpu.dimension_semantics<parallel>], iteration_bounds = array<i64: 4>, scalar_prefetch = 0 : i64, scratch_operands = 0 : i64, tpu.core_type = #tpu.core_type<tc>, window_params = [{pipeline_mode = #tpu.pipeline_mode<synchronous>, transform_indices = @transform_0, window_bounds = array<i64: 2, 128>}, {transform_indices = @transform_1, window_bounds = array<i64: 16, 1>}, {transform_indices = @transform_2, window_bounds = array<i64: 16, 128>}]} {
    %c0 = arith.constant 0 : index
    %c0_0 = arith.constant 0 : index
    %0 = vector.load %arg1[%c0, %c0_0] : memref<2x128xf32, #tpu.memory_space<vmem>>, vector<1x128xf32>
    %c1 = arith.constant 1 : index
    %c0_1 = arith.constant 0 : index
    %1 = vector.load %arg1[%c1, %c0_1] : memref<2x128xf32, #tpu.memory_space<vmem>>, vector<1x128xf32>
    %c0_2 = arith.constant 0 : index
    %c0_3 = arith.constant 0 : index
    %2 = vector.load %arg2[%c0_2, %c0_3] : memref<16x1xf32, #tpu.memory_space<vmem>>, vector<16x1xf32>
    %3 = vector.broadcast %2 : vector<16x1xf32> to vector<16x128xf32>
    %4 = vector.broadcast %0 : vector<1x128xf32> to vector<16x128xf32>
    %5 = arith.mulf %3, %4 : vector<16x128xf32>
    %6 = vector.broadcast %1 : vector<1x128xf32> to vector<16x128xf32>
    %7 = arith.addf %5, %6 : vector<16x128xf32>
    %8 = math.sin %7 : vector<16x128xf32>
    %c0_4 = arith.constant 0 : index
    %c0_5 = arith.constant 0 : index
    %9 = vector.load %arg3[%c0_4, %c0_5] : memref<16x128xf32, #tpu.memory_space<vmem>>, vector<16x128xf32>
    tpu.vector_store %arg3[%c0_4, %c0_5], %8 {strides = array<i32>} : memref<16x128xf32, #tpu.memory_space<vmem>>, vector<16x128xf32>,
    return
  }
  func.func @transform_0(%arg0: i32) -> (i32, i32) {
    %c0_i32 = arith.constant 0 : i32
    %c0_i32_0 = arith.constant 0 : i32
    %c0_i32_1 = arith.constant 0 : i32
    return %c0_i32, %c0_i32_0 : i32, i32
  }
  func.func @transform_1(%arg0: i32) -> (i32, i32) {
    %c0_i32 = arith.constant 0 : i32
    %c0_i32_0 = arith.constant 0 : i32
    return %arg0, %c0_i32 : i32, i32
  }
  func.func @transform_2(%arg0: i32) -> (i32, i32) {
    %c0_i32 = arith.constant 0 : i32
    %c0_i32_0 = arith.constant 0 : i32
    return %arg0, %c0_i32 : i32, i32
  }
}

</mosaic_0001>

<llo_original>
// kernel: tpu_custom_call.1
$region0: #{tpu_custom_call.1}
  #allocation0 [shape = 'u32[]', space=smem, size = 0x4, offset = 0x4, fixed_abs, tag = 'smem constant byte address 0x4 - core index']
  #allocation1 [shape = 'u32[144,128]{1,0:T(1,128)}', space=vmem, size = 0x12000, scoped, tag = 'internal scratch']
  %s0 = inlined_call_operand.vmem [shape: f32[2,128], index: 0, kind: input, shape index: {}]
  %s1 = inlined_call_operand.vmem [shape: f32[64,1], index: 1, kind: input, shape index: {}]
  %s2 = inlined_call_operand.hbm [shape: f32[64,128], index: 2, kind: output, shape index: {}]
  %s3 = sld [smem:[#allocation0]]
  $region41: #{tpu_custom_call.1} parent=0
    _
  %s5 = ssub.s32 1, %s3
  %s6 = scalar_select 0, %s5, %s3
  $region1: #{tpu_custom_call.1} parent=0
    #allocation2 [shape = 'u8[16384]{0}', space=vmem, size = 0x4000, scoped, tag = 'output window, operand 0']
    #allocation3 [shape = 's32[2]{0}', space=sflag, size = 0x8, scoped, tag = 'scoped memory for tpu_custom_call.1']
    %7 = vsyncpa [#allocation3], 0
    %s8 = scalar_lea.sflag [#allocation3], 1
    %9 = vsyncpa %s8, 0
    loop: start=0, step=1, limit=6
    $region2: #{tpu_custom_call.1} parent=1 // loop_pre_header
      _
    $region3: #{tpu_custom_call.1} parent=1 // loop_header
      %s11 = sphi 0, %s15
      %p12 = scmp.ge.s32.totalorder %s11, 6
      %s19 = sphi 0, %s19
      %s21 = sphi 0, %s19
      %s22 = sphi 0, %s21
      %s36 = sphi 0, %s22
      %s42 = sphi 0, %s44
      %s45 = sphi 0, %s42
      %s46 = sphi 0, %s45
      %s62 = sphi 0, %s46
      %s68 = sphi 0, %s70
      %s71 = sphi 0, %s68
      %s72 = sphi 0, %s71
      %s88 = sphi 0, %s72
    $region4: #{tpu_custom_call.1} parent=1 // loop_header_branch
      %14 = sbr.rel (%p12) target = $region8
    $region5: #{tpu_custom_call.1} parent=1 // loop_body
      %s16 = ssub.s32 %s11, 1
      %s17 = ssub.s32 %s11, 2
      %s18 = sadd.s32 %s11, 1
      %s20 = sadd.s32 %s19, 1
      %p23 = scmp.eq.s32.totalorder %s11, 3
      %p24 = scmp.ne.s32.totalorder %s19, %s21
      %p25 = scmp.eq.s32.totalorder %s11, 0
      %p26 = por %p24, %p25
      %p27 = scmp.ne.s32.totalorder %s19, %s21
      %p28 = scmp.eq.s32.totalorder %s16, 3
      %p29 = por %p27, %p28
      %p30 = scmp.ne.s32.totalorder %s21, %s22
      %p31 = scmp.eq.s32.totalorder %s16, 0
      %p32 = por %p30, %p31
      %p33 = scmp.ne.s32.totalorder %s21, %s22
      %p34 = scmp.eq.s32.totalorder %s17, 3
      %p35 = por %p33, %p34
      %p37 = scmp.ne.s32.totalorder %s22, %s36
      %p38 = scmp.eq.s32.totalorder %s17, 0
      %p39 = por %p37, %p38
      %s40 = ssub.s32 %s11, %s18
      %p41 = scmp.eq.s32.totalorder %s40, 0
      %s43 = sadd.s32 %s42, 1
      %s44 = scalar_select %p41, %s42, %s43
      %p47 = pneg %p41
      %p48 = scmp.eq.s32.totalorder %s11, 3
      %p49 = por %p47, %p48
      %p50 = scmp.ne.s32.totalorder %s42, %s45
      %p51 = scmp.eq.s32.totalorder %s11, 0
      %p52 = por %p50, %p51
      %p53 = scmp.ne.s32.totalorder %s42, %s45
      %p54 = scmp.eq.s32.totalorder %s16, 3
      %p55 = por %p53, %p54
      %p56 = scmp.ne.s32.totalorder %s45, %s46
      %p57 = scmp.eq.s32.totalorder %s16, 0
      %p58 = por %p56, %p57
      %p59 = scmp.ne.s32.totalorder %s45, %s46
      %p60 = scmp.eq.s32.totalorder %s17, 3
      %p61 = por %p59, %p60
      %p63 = scmp.ne.s32.totalorder %s46, %s62
      %p64 = scmp.eq.s32.totalorder %s17, 0
      %p65 = por %p63, %p64
      %s66 = ssub.s32 %s11, %s18
      %p67 = scmp.eq.s32.totalorder %s66, 0
      %s69 = sadd.s32 %s68, 1
      %s70 = scalar_select %p67, %s68, %s69
      %p73 = pneg %p67
      %p74 = scmp.eq.s32.totalorder %s11, 3
      %p75 = por %p73, %p74
      %p76 = scmp.ne.s32.totalorder %s68, %s71
      %p77 = scmp.eq.s32.totalorder %s11, 0
      %p78 = por %p76, %p77
      %p79 = scmp.ne.s32.totalorder %s68, %s71
      %p80 = scmp.eq.s32.totalorder %s16, 3
      %p81 = por %p79, %p80
      %p82 = scmp.ne.s32.totalorder %s71, %s72
      %p83 = scmp.eq.s32.totalorder %s16, 0
      %p84 = por %p82, %p83
      %p85 = scmp.ne.s32.totalorder %s71, %s72
      %p86 = scmp.eq.s32.totalorder %s17, 3
      %p87 = por %p85, %p86
      %p89 = scmp.ne.s32.totalorder %s72, %s88
      %p90 = scmp.eq.s32.totalorder %s17, 0
      %p91 = por %p89, %p90
      %p92 = scmp.le.s32.totalorder 1, %s11
      %p93 = scmp.lt.s32.totalorder %s11, 5
      %p94 = pnand %p92, %p93
      %p95 = pneg %p94
      // Predicated region
      $region9: #{tpu_custom_call.1} parent=5 // pred_check
        _
      $region10: #{tpu_custom_call.1} parent=5 // pred_check_branch
        %97 = sbr.rel (%p94) target = $region12
      $region11: #{tpu_custom_call.1} parent=5 // pred_region
        %s98 = ssub.s32 %s11, 1
        // Predicated region
        $region13: #{tpu_custom_call.1} parent=11 // pred_check
          %p99 = pneg %p32
        $region14: #{tpu_custom_call.1} parent=11 // pred_check_branch
          %101 = sbr.rel (%p99) target = $region16
        $region15: #{tpu_custom_call.1} parent=11 // pred_region
          _
        $region16: #{tpu_custom_call.1} parent=11 // pred_fallthru
          _
      $region12: #{tpu_custom_call.1} parent=5 // pred_fallthru
        _
      %p102 = scmp.lt.s32.totalorder %s11, 4
      // Predicated region
      $region17: #{tpu_custom_call.1} parent=5 // pred_check
        %p103 = pneg %p102
      $region18: #{tpu_custom_call.1} parent=5 // pred_check_branch
        %105 = sbr.rel (%p103) target = $region20
      $region19: #{tpu_custom_call.1} parent=5 // pred_region
        // Predicated region
        $region21: #{tpu_custom_call.1} parent=19 // pred_check
          %p106 = pneg %p52
        $region22: #{tpu_custom_call.1} parent=19 // pred_check_branch
          %108 = sbr.rel (%p106) target = $region24
        $region23: #{tpu_custom_call.1} parent=19 // pred_region
          %s109 = smul.u32 2, %s11
          %p110 = scmp.lt.s32.totalorder %s109, 7
          %s111 = scalar_select %p110, %s109, 7
          %s112 = smul.addr %s111, 8
          %s113 = scalar_lea.vmem %s1, %s112
          %s114 = smul.u32 2, %s11
        $region24: #{tpu_custom_call.1} parent=19 // pred_fallthru
          _
      $region20: #{tpu_custom_call.1} parent=5 // pred_fallthru
        _
      %p115 = scmp.le.s32.totalorder 1, %s11
      %p116 = scmp.lt.s32.totalorder %s11, 5
      %p117 = pnand %p115, %p116
      %p118 = pneg %p117
      // Predicated region
      $region25: #{tpu_custom_call.1} parent=5 // pred_check
        _
      $region26: #{tpu_custom_call.1} parent=5 // pred_check_branch
        %120 = sbr.rel (%p117) target = $region28
      $region27: #{tpu_custom_call.1} parent=5 // pred_region
        %s121 = ssub.s32 %s11, 1
        %p122 = pneg %p32
        %p123 = pneg %p29
        %s124 = smul.u32 2, %s16
        %p125 = scmp.lt.s32.totalorder %s124, 7
        %s126 = scalar_select %p125, %s124, 7
        %s127 = smul.addr %s126, 8
        %s128 = scalar_lea.vmem %s1, %s127
        %p129 = pneg %p58
        %p130 = pneg %p55
        %p131 = pneg %p84
        %p132 = pneg %p81
        %s133 = sand.u32 %s71, 1
        %s134 = scalar_lea.sflag [#allocation3], %s133
        %s135 = sand.u32 %s71, 1
        %s136 = smul.addr %s135, 16
        %s137 = scalar_lea.vmem [#allocation2], %s136
        %s138 = smul.u32 2, %s16
        %p139 = scmp.lt.s32.totalorder %s138, 7
        %s140 = scalar_select %p139, %s138, 7
        %s141 = smul.addr %s140, 8
        %s142 = scalar_lea.vmem %s1, %s141
        %s143 = smul.u32 2, %s16
        %s144 = smul.u32 2, %s16
        %v145 = vld [vmem:[%s0] sm:$0x1]
        %v146 = vld [vmem:[%s0 + $0x1] sm:$0x1]
        %v147 = vld [vmem:[%s142] sm:$0xff]
        %v148 = vld [vmem:[%s142 + $0x8] sm:$0xff]
        %150 = vset.pattern.permute.xlu0 0
        %151 = vperm.xlu0 %150, %v147
        %v152 = vpop.permute.xlu0 %151
        %155 = vset.pattern.permute.xlu0 0
        %156 = vperm.xlu0 %155, %v148
        %v157 = vpop.permute.xlu0 %156
        %v159 = vlaneseq
        %v160 = vshrl.u32 %v159, 7
        %v161 = vsub.s32 0, %v160
        %v162 = vrot.slane %v145, %v161
        %v163 = vmul.f32 %v152, %v162
        %v164 = vmul.f32 %v157, %v162
        %v165 = vlaneseq
        %v166 = vshrl.u32 %v165, 7
        %v167 = vsub.s32 0, %v166
        %v168 = vrot.slane %v146, %v167
        %v169 = vadd.f32 %v163, %v168
        %v170 = vadd.f32 %v164, %v168
        %v171 = vand.u32 2147483647, %v169
        %vm172 = vcmp.le.f32.partialorder %v171, 0.7853982
        %vm173 = vcmp.lt.s32.totalorder %v169, 0
        %v174 = vand.u32 %v169, 2139095040
        %v175 = vshrl.u32 %v174, 23
        %v176 = vsub.s32 %v175, 127
        %v177 = vand.u32 2147483647, %v169
        %v178 = vand.u32 %v177, 8388607
        %v179 = vor.u32 %v178, 8388608
        %v180 = vsub.s32 0, %v179
        %v181 = vadd.s32 %v176, 1
        %vm182 = vcmp.gt.s32.totalorder %v181, 0
        %v183 = vsel %vm182, %v181, 0
        %v184 = vshrl.u32 %v183, 5
        %v185 = vand.u32 %v183, 31
        %v186 = vsub.s32 32, %v185
        %v187 = vshrl.u32 683565275, %v186
        %v188 = vshll.u32 683565275, %v185
        %v189 = vshrl.u32 2475754826, %v186
        %v190 = vor.u32 %v188, %v189
        %v191 = vshll.u32 2475754826, %v185
        %v192 = vshrl.u32 2131351028, %v186
        %v193 = vor.u32 %v191, %v192
        %v194 = vshll.u32 2131351028, %v185
        %v195 = vshrl.u32 2102212464, %v186
        %v196 = vor.u32 %v194, %v195
        %v197 = vshll.u32 2102212464, %v185
        %v198 = vshrl.u32 920167782, %v186
        %v199 = vor.u32 %v197, %v198
        %v200 = vshll.u32 920167782, %v185
        %v201 = vshrl.u32 1326507024, %v186
        %v202 = vor.u32 %v200, %v201
        %vm203 = vcmp.lt.s32.totalorder %v184, 1
        %vm204 = vcmp.lt.s32.totalorder %v184, 2
        %vm205 = vcmp.lt.s32.totalorder %v184, 3
        %vm206 = vcmp.lt.s32.totalorder %v184, 4
        %v207 = vsel %vm203, %v187, %v190
        %v208 = vsel %vm206, %v196, 2102212464
        %v209 = vsel %vm205, %v193, %v208
        %v210 = vsel %vm204, %v207, %v209
        %v211 = vsel %vm203, %v190, %v193
        %v212 = vsel %vm206, %v199, 920167782
        %v213 = vsel %vm205, %v196, %v212
        %v214 = vsel %vm204, %v211, %v213
        %v215 = vsel %vm203, %v193, %v196
        %v216 = vsel %vm206, %v202, 1326507024
        %v217 = vsel %vm205, %v199, %v216
        %v218 = vsel %vm204, %v215, %v217
        %v219 = vshll.u32 %v179, 8
        %v220 = vmul.u32.u64.compose %v219, %v218
        %v221 = vextract.low.u32 %v220
        %v222 = vextract.high.u32 %v220
        %v223 = vmul.u32.u64.compose %v219, %v214
        %v224 = vextract.low.u32 %v223
        %v225 = vextract.high.u32 %v223
        %v226 = vmul.u32 %v219, %v210
        %v227 = vadd.s32 %v222, %v224
        %vm228 = vc.u32 %v222, %v224
        %v229 = vadd.s32 %v225, 1
        %v230 = vsel %vm228, %v229, %v225
        %v231 = vadd.s32 %v226, %v230
        %v232 = vadd.s32 %v231, 536870912
        %v233 = vshrl.u32 %v232, 30
        %v234 = vshll.u32 %v233, 30
        %v235 = vsub.s32 %v231, %v234
        %vm236 = vcmp.lt.s32.totalorder %v235, 0
        %v237 = vsub.s32 0, %v235
        %v238 = vsel %vm236, %v237, %v235
        %v239 = vclz %v238
        %v240 = vsub.s32 %v239, 2
        %vm241 = vcmp.gt.s32.totalorder 0, %v240
        %v242 = vsel %vm241, 0, %v240
        %v243 = vsub.s32 32, %v242
        %v244 = vshll.u32 %v235, %v242
        %v245 = vshrl.u32 %v227, %v243
        %v246 = vor.u32 %v244, %v245
        %v247 = vsub.s32 4294967266, %v242
        %v248 = vadd.s32 %v247, 127
        %v249 = vshll.u32 %v248, 23
        %v250 = vor.u32 4788187, %v249
        %v251 = vand.u32 2147483647, %v250
        %v253 = vcvt.s32.f32 %v246
        %v254 = vmul.f32 %v253, %v251
        %v255 = vxor.u32 %v254, 2147483648
        %v256 = vsel %vm173, %v255, %v254
        %v257 = vsub.s32 4, %v233
        %v258 = vsel %vm173, %v257, %v233
        %v259 = vsel %vm172, %v169, %v256
        %v260 = vsel %vm172, 0, %v258
        %v261 = vcosq.f32.pop %v259
        %v262 = vsinq.f32.pop %v259
        %vm263 = vweird.f32 %v169
        %v264 = vadd.s32 %v260, 3
        %v265 = vand.u32 %v264, 3
        %vm266 = vcmp.lt.s32.totalorder %v265, 2
        %vm267 = vcmp.eq.s32.totalorder %v265, 0
        %v268 = vxor.u32 %v262, 2147483648
        %v269 = vsel %vm267, %v261, %v268
        %vm270 = vcmp.eq.s32.totalorder %v265, 2
        %v271 = vxor.u32 %v261, 2147483648
        %v272 = vsel %vm270, %v271, %v262
        %v273 = vsel %vm266, %v269, %v272
        %v274 = vsel %vm263, nan, %v273
        %v275 = vand.u32 2147483647, %v170
        %vm276 = vcmp.le.f32.partialorder %v275, 0.7853982
        %vm277 = vcmp.lt.s32.totalorder %v170, 0
        %v278 = vand.u32 %v170, 2139095040
        %v279 = vshrl.u32 %v278, 23
        %v280 = vsub.s32 %v279, 127
        %v281 = vand.u32 2147483647, %v170
        %v282 = vand.u32 %v281, 8388607
        %v283 = vor.u32 %v282, 8388608
        %v284 = vsub.s32 0, %v283
        %v285 = vadd.s32 %v280, 1
        %vm286 = vcmp.gt.s32.totalorder %v285, 0
        %v287 = vsel %vm286, %v285, 0
        %v288 = vshrl.u32 %v287, 5
        %v289 = vand.u32 %v287, 31
        %v290 = vsub.s32 32, %v289
        %v291 = vshrl.u32 683565275, %v290
        %v292 = vshll.u32 683565275, %v289
        %v293 = vshrl.u32 2475754826, %v290
        %v294 = vor.u32 %v292, %v293
        %v295 = vshll.u32 2475754826, %v289
        %v296 = vshrl.u32 2131351028, %v290
        %v297 = vor.u32 %v295, %v296
        %v298 = vshll.u32 2131351028, %v289
        %v299 = vshrl.u32 2102212464, %v290
        %v300 = vor.u32 %v298, %v299
        %v301 = vshll.u32 2102212464, %v289
        %v302 = vshrl.u32 920167782, %v290
        %v303 = vor.u32 %v301, %v302
        %v304 = vshll.u32 920167782, %v289
        %v305 = vshrl.u32 1326507024, %v290
        %v306 = vor.u32 %v304, %v305
        %vm307 = vcmp.lt.s32.totalorder %v288, 1
        %vm308 = vcmp.lt.s32.totalorder %v288, 2
        %vm309 = vcmp.lt.s32.totalorder %v288, 3
        %vm310 = vcmp.lt.s32.totalorder %v288, 4
        %v311 = vsel %vm307, %v291, %v294
        %v312 = vsel %vm310, %v300, 2102212464
        %v313 = vsel %vm309, %v297, %v312
        %v314 = vsel %vm308, %v311, %v313
        %v315 = vsel %vm307, %v294, %v297
        %v316 = vsel %vm310, %v303, 920167782
        %v317 = vsel %vm309, %v300, %v316
        %v318 = vsel %vm308, %v315, %v317
        %v319 = vsel %vm307, %v297, %v300
        %v320 = vsel %vm310, %v306, 1326507024
        %v321 = vsel %vm309, %v303, %v320
        %v322 = vsel %vm308, %v319, %v321
        %v323 = vshll.u32 %v283, 8
        %v324 = vmul.u32.u64.compose %v323, %v322
        %v325 = vextract.low.u32 %v324
        %v326 = vextract.high.u32 %v324
        %v327 = vmul.u32.u64.compose %v323, %v318
        %v328 = vextract.low.u32 %v327
        %v329 = vextract.high.u32 %v327
        %v330 = vmul.u32 %v323, %v314
        %v331 = vadd.s32 %v326, %v328
        %vm332 = vc.u32 %v326, %v328
        %v333 = vadd.s32 %v329, 1
        %v334 = vsel %vm332, %v333, %v329
        %v335 = vadd.s32 %v330, %v334
        %v336 = vadd.s32 %v335, 536870912
        %v337 = vshrl.u32 %v336, 30
        %v338 = vshll.u32 %v337, 30
        %v339 = vsub.s32 %v335, %v338
        %vm340 = vcmp.lt.s32.totalorder %v339, 0
        %v341 = vsub.s32 0, %v339
        %v342 = vsel %vm340, %v341, %v339
        %v343 = vclz %v342
        %v344 = vsub.s32 %v343, 2
        %vm345 = vcmp.gt.s32.totalorder 0, %v344
        %v346 = vsel %vm345, 0, %v344
        %v347 = vsub.s32 32, %v346
        %v348 = vshll.u32 %v339, %v346
        %v349 = vshrl.u32 %v331, %v347
        %v350 = vor.u32 %v348, %v349
        %v351 = vsub.s32 4294967266, %v346
        %v352 = vadd.s32 %v351, 127
        %v353 = vshll.u32 %v352, 23
        %v354 = vor.u32 4788187, %v353
        %v355 = vand.u32 2147483647, %v354
        %v357 = vcvt.s32.f32 %v350
        %v358 = vmul.f32 %v357, %v355
        %v359 = vxor.u32 %v358, 2147483648
        %v360 = vsel %vm277, %v359, %v358
        %v361 = vsub.s32 4, %v337
        %v362 = vsel %vm277, %v361, %v337
        %v363 = vsel %vm276, %v170, %v360
        %v364 = vsel %vm276, 0, %v362
        %v365 = vcosq.f32.pop %v363
        %v366 = vsinq.f32.pop %v363
        %vm367 = vweird.f32 %v170
        %v368 = vadd.s32 %v364, 3
        %v369 = vand.u32 %v368, 3
        %vm370 = vcmp.lt.s32.totalorder %v369, 2
        %vm371 = vcmp.eq.s32.totalorder %v369, 0
        %v372 = vxor.u32 %v366, 2147483648
        %v373 = vsel %vm371, %v365, %v372
        %vm374 = vcmp.eq.s32.totalorder %v369, 2
        %v375 = vxor.u32 %v365, 2147483648
        %v376 = vsel %vm374, %v375, %v366
        %v377 = vsel %vm370, %v373, %v376
        %v378 = vsel %vm367, nan, %v377
        %379 = vst [vmem:[%s137] sm:$0xff] %v274
        %380 = vst [vmem:[%s137 + $0x8] sm:$0xff] %v378
        %s381 = sand.u32 %s71, 1
        %s382 = scalar_lea.sflag [#allocation3], %s381
        %s383 = sand.u32 %s71, 1
        %s384 = smul.addr %s383, 16
        %s385 = scalar_lea.vmem [#allocation2], %s384
        // Predicated region
        $region29: #{tpu_custom_call.1} parent=27 // pred_check
          %p386 = pneg %p81
        $region30: #{tpu_custom_call.1} parent=27 // pred_check_branch
          %388 = sbr.rel (%p386) target = $region32
        $region31: #{tpu_custom_call.1} parent=27 // pred_region
          %s389 = smul.u32 2, %s16
          %s391 = ssub.s32 256, 256
          %392 = vsyncadd %s382, %s391
          %s393 = smul.addr %s389, 128
          %s394 = scalar_lea.hbm %s2, %s393
          %s395 = sshll.u32 %s385, 4
          %s396 = int_to_ptr.vmem [resolvable:$true] %s395
          %401 = dma.vmem_to_hbm [thread:$0]  %s396, 256, %s394, %s382, 128, 128, 8
        $region32: #{tpu_custom_call.1} parent=27 // pred_fallthru
          _
      $region28: #{tpu_custom_call.1} parent=5 // pred_fallthru
        _
      %p402 = scmp.le.s32.totalorder 2, %s11
      // Predicated region
      $region33: #{tpu_custom_call.1} parent=5 // pred_check
        %p403 = pneg %p402
      $region34: #{tpu_custom_call.1} parent=5 // pred_check_branch
        %405 = sbr.rel (%p403) target = $region36
      $region35: #{tpu_custom_call.1} parent=5 // pred_region
        %s406 = ssub.s32 %s11, 2
        // Predicated region
        $region37: #{tpu_custom_call.1} parent=35 // pred_check
          %p407 = pneg %p87
        $region38: #{tpu_custom_call.1} parent=35 // pred_check_branch
          %409 = sbr.rel (%p407) target = $region40
        $region39: #{tpu_custom_call.1} parent=35 // pred_region
          %s410 = sand.u32 %s72, 1
          %s411 = scalar_lea.sflag [#allocation3], %s410
          %s412 = sand.u32 %s72, 1
          %s413 = smul.addr %s412, 16
          %s414 = scalar_lea.vmem [#allocation2], %s413
          %415 = dma.done %s411, 256
        $region40: #{tpu_custom_call.1} parent=35 // pred_fallthru
          _
      $region36: #{tpu_custom_call.1} parent=5 // pred_fallthru
        _
    $region6: #{tpu_custom_call.1} parent=1 // loop_footer
      %s15 = sadd.s32 1, %s11
    $region7: #{tpu_custom_call.1} parent=1 // loop_footer_branch
      %10 = sbr.rel target = $region3
    $region8: #{tpu_custom_call.1} parent=1 // loop_exit
      _
    %416 = vsyncpa [#allocation3], 1
    %s417 = scalar_lea.sflag [#allocation3], 1
    %418 = vsyncpa %s417, 1

</llo_original>
